<compile_context>
chip_gen: v7x
topology: tpu7x:2x2x1
jax: 0.10.0
libtpu: 0.0.40
codegen_flags: <defaults>
</compile_context>

<pallas_src>
import jax
import jax.numpy as jnp
from jax.experimental import pallas as pl
from jax.experimental.pallas import tpu as pltpu


def mlp_kernel(x_ref, w1_ref, b1_ref, w2_ref, b2_ref, o_ref):
    # x arrives f32; cast to bf16 on the VPU just before the MXU matmul.
    x_bf = x_ref[...].astype(jnp.bfloat16)
    # hidden = relu(x @ W1 + b1): bf16 MXU inputs, f32 accumulation,
    # f32 bias-add + ReLU on the VPU (v5e has no bf16 VALU path).
    h = jnp.dot(x_bf, w1_ref[...], preferred_element_type=jnp.float32)
    h = jnp.maximum(h + b1_ref[...], 0.0)
    # logits = hidden @ W2 + b2: cast hidden to bf16 only at the MXU input.
    out = jnp.dot(h.astype(jnp.bfloat16), w2_ref[...],
                  preferred_element_type=jnp.float32)
    o_ref[...] = (out + b2_ref[...]).astype(o_ref.dtype)


def mlp_forward(x_nchw, w1, b1, w2, b2):
    """relu(flatten(x) @ w1 + b1) @ w2 + b2, as a single Pallas kernel."""
    B = x_nchw.shape[0]
    D, H = w1.shape
    C = w2.shape[1]

    # --- Glue / layout prep (wrapper-side, cheap) -------------------------
    # Flatten NCHW -> (B, D), same ordering as torch.nn.Flatten(); keep f32
    # (the kernel casts to bf16 in VMEM, avoiding a separate convert pass).
    x2d = x_nchw.reshape(B, D)

    # Lane-dense classifier dim: pad C up to a multiple of 128.  Padded bias
    # columns get a large negative so an argmax over the padded buffer can
    # never pick a padding class.
    NP = max(128, ((C + 127) // 128) * 128)
    w2p = jnp.zeros((H, NP), jnp.bfloat16).at[:, :C].set(w2.astype(jnp.bfloat16))
    b2p = jnp.full((1, NP), -1e30, jnp.float32).at[:, :C].set(
        b2.astype(jnp.float32).reshape(1, C))

    w1b = w1.astype(jnp.bfloat16)
    b1f = b1.astype(jnp.float32).reshape(1, H)

    # --- Batch tiling: weights stay resident across batch steps ----------
    # >= 8 rows (sublane granularity), up to 512 rows per grid step.
    TB = min(max(((B + 7) // 8) * 8, 8), 512)
    B_pad = ((B + TB - 1) // TB) * TB
    nb = B_pad // TB
    if nb > 1 and nb % 2 == 1:
        # Even grid so a 2-TensorCore chip (v7x) can split the batch axis.
        nb += 1
        B_pad = nb * TB
    if B_pad != B:
        x2d = jnp.pad(x2d, ((0, B_pad - B), (0, 0)))

    cost = pl.CostEstimate(
        flops=2 * B_pad * D * H + 2 * B_pad * H * NP,
        transcendentals=0,
        bytes_accessed=(x2d.size * 4 + w1b.size * 2 + w2p.size * 2
                        + b1f.size * 4 + b2p.size * 4 + B_pad * NP * 2),
    )

    out = pl.pallas_call(
        mlp_kernel,
        out_shape=jax.ShapeDtypeStruct((B_pad, NP), jnp.bfloat16),
        grid=(nb,),
        in_specs=[
            pl.BlockSpec((TB, D), lambda i: (i, 0)),   # x tile (f32)
            pl.BlockSpec((D, H), lambda i: (0, 0)),    # W1 bf16 (resident)
            pl.BlockSpec((1, H), lambda i: (0, 0)),    # b1 f32  (resident)
            pl.BlockSpec((H, NP), lambda i: (0, 0)),   # W2 bf16 padded (resident)
            pl.BlockSpec((1, NP), lambda i: (0, 0)),   # b2 f32  padded (resident)
        ],
        out_specs=pl.BlockSpec((TB, NP), lambda i: (i, 0)),
        compiler_params=pltpu.CompilerParams(
            dimension_semantics=("parallel",),
            vmem_limit_bytes=32 * 1024 * 1024),
        cost_estimate=cost,
    )(x2d, w1b, b1f, w2p, b2p)

    # Slice away batch padding and the padded classifier columns.  (A consumer
    # doing argmax could skip this slice and read the padded buffer directly:
    # padded columns are pinned at -1e30.)
    return out[:B, :C]


if __name__ == "__main__":
    # Small shapes consistent with an image-classification forward pass.
    B, Cin, Himg, Wimg = 2, 4, 16, 16
    D = Cin * Himg * Wimg            # 1024 flattened features
    HID = 128                        # hidden width
    NUM_CLASSES = 10                 # logits dim (argmax over dim=1 in Model)

    key = jax.random.PRNGKey(0)
    kx, kw1, kb1, kw2, kb2 = jax.random.split(key, 5)

    x = jax.random.normal(kx, (B, Cin, Himg, Wimg), dtype=jnp.float32)

    # Deterministic PyTorch-like Linear init: U(-1/sqrt(fan_in), 1/sqrt(fan_in))
    lim1 = 1.0 / jnp.sqrt(jnp.float32(D))
    w1 = jax.random.uniform(kw1, (D, HID), jnp.float32, -lim1, lim1)
    b1 = jax.random.uniform(kb1, (HID,), jnp.float32, -lim1, lim1)
    lim2 = 1.0 / jnp.sqrt(jnp.float32(HID))
    w2 = jax.random.uniform(kw2, (HID, NUM_CLASSES), jnp.float32, -lim2, lim2)
    b2 = jax.random.uniform(kb2, (NUM_CLASSES,), jnp.float32, -lim2, lim2)

    fwd = jax.jit(mlp_forward)
    out = jax.block_until_ready(fwd(x, w1, b1, w2, b2))

    # Pure-JAX f32 reference of Model.forward with this module_list.
    ref = jnp.maximum(x.reshape(B, D) @ w1 + b1, 0.0) @ w2 + b2
    assert out.shape == (B, NUM_CLASSES)
    # bf16 MXU inputs + bf16 output (f32 accumulation) -> loosened tolerance.
    assert jnp.allclose(out.astype(jnp.float32), ref, atol=2e-2, rtol=2e-2)

    print("KERNEL_OK")
</pallas_src>

<mosaic_0001>
module attributes {stable_mosaic.version = 11 : i64} {
  func.func @mlp_kernel(%arg0: i32, %arg1: memref<8x1024xf32, #tpu.memory_space<vmem>>, %arg2: memref<1024x128xbf16, #tpu.memory_space<vmem>>, %arg3: memref<1x128xf32, #tpu.memory_space<vmem>>, %arg4: memref<128x128xbf16, #tpu.memory_space<vmem>>, %arg5: memref<1x128xf32, #tpu.memory_space<vmem>>, %arg6: memref<8x128xbf16, #tpu.memory_space<vmem>>) attributes {dimension_semantics = [#tpu.dimension_semantics<parallel>], iteration_bounds = array<i64: 1>, scalar_prefetch = 0 : i64, scratch_operands = 0 : i64, tpu.core_type = #tpu.core_type<tc>, window_params = [{transform_indices = @transform_0, window_bounds = array<i64: 8, 1024>}, {pipeline_mode = #tpu.pipeline_mode<synchronous>, transform_indices = @transform_1, window_bounds = array<i64: 1024, 128>}, {pipeline_mode = #tpu.pipeline_mode<synchronous>, transform_indices = @transform_2, window_bounds = array<i64: 1, 128>}, {pipeline_mode = #tpu.pipeline_mode<synchronous>, transform_indices = @transform_3, window_bounds = array<i64: 128, 128>}, {pipeline_mode = #tpu.pipeline_mode<synchronous>, transform_indices = @transform_4, window_bounds = array<i64: 1, 128>}, {transform_indices = @transform_5, window_bounds = array<i64: 8, 128>}]} {
    %c0 = arith.constant 0 : index
    %c0_0 = arith.constant 0 : index
    %0 = vector.load %arg1[%c0, %c0_0] : memref<8x1024xf32, #tpu.memory_space<vmem>>, vector<8x1024xf32>
    %1 = arith.truncf %0 : vector<8x1024xf32> to vector<8x1024xbf16>
    %c0_1 = arith.constant 0 : index
    %c0_2 = arith.constant 0 : index
    %2 = vector.load %arg2[%c0_1, %c0_2] : memref<1024x128xbf16, #tpu.memory_space<vmem>>, vector<1024x128xbf16>
    %cst = arith.constant dense<0.000000e+00> : vector<8x128xf32>
    %3 = tpu.matmul %1, %2, %cst {dimension_numbers = #tpu.dot_dimension_numbers<[1], [0], [0], [1], [0, 0, 1, 1], [], []>} : vector<8x1024xbf16>, vector<1024x128xbf16>, vector<8x128xf32> -> vector<8x128xf32>
    %c0_3 = arith.constant 0 : index
    %c0_4 = arith.constant 0 : index
    %4 = vector.load %arg3[%c0_3, %c0_4] : memref<1x128xf32, #tpu.memory_space<vmem>>, vector<1x128xf32>
    %5 = vector.broadcast %4 : vector<1x128xf32> to vector<8x128xf32>
    %6 = arith.addf %3, %5 : vector<8x128xf32>
    %cst_5 = arith.constant 0.000000e+00 : f32
    %7 = vector.broadcast %cst_5 : f32 to vector<8x128xf32>
    %8 = arith.maximumf %6, %7 : vector<8x128xf32>
    %9 = arith.truncf %8 : vector<8x128xf32> to vector<8x128xbf16>
    %c0_6 = arith.constant 0 : index
    %c0_7 = arith.constant 0 : index
    %10 = vector.load %arg4[%c0_6, %c0_7] : memref<128x128xbf16, #tpu.memory_space<vmem>>, vector<128x128xbf16>
    %cst_8 = arith.constant dense<0.000000e+00> : vector<8x128xf32>
    %11 = tpu.matmul %9, %10, %cst_8 {dimension_numbers = #tpu.dot_dimension_numbers<[1], [0], [0], [1], [0, 0, 1, 1], [], []>} : vector<8x128xbf16>, vector<128x128xbf16>, vector<8x128xf32> -> vector<8x128xf32>
    %c0_9 = arith.constant 0 : index
    %c0_10 = arith.constant 0 : index
    %12 = vector.load %arg5[%c0_9, %c0_10] : memref<1x128xf32, #tpu.memory_space<vmem>>, vector<1x128xf32>
    %13 = vector.broadcast %12 : vector<1x128xf32> to vector<8x128xf32>
    %14 = arith.addf %11, %13 : vector<8x128xf32>
    %15 = arith.truncf %14 : vector<8x128xf32> to vector<8x128xbf16>
    %c0_11 = arith.constant 0 : index
    %c0_12 = arith.constant 0 : index
    %16 = vector.load %arg6[%c0_11, %c0_12] : memref<8x128xbf16, #tpu.memory_space<vmem>>, vector<8x128xbf16>
    tpu.vector_store %arg6[%c0_11, %c0_12], %15 {strides = array<i32>} : memref<8x128xbf16, #tpu.memory_space<vmem>>, vector<8x128xbf16>,
    return
  }
  func.func @transform_0(%arg0: i32) -> (i32, i32) {
    %c0_i32 = arith.constant 0 : i32
    %c0_i32_0 = arith.constant 0 : i32
    return %arg0, %c0_i32 : i32, i32
  }
  func.func @transform_1(%arg0: i32) -> (i32, i32) {
    %c0_i32 = arith.constant 0 : i32
    %c0_i32_0 = arith.constant 0 : i32
    %c0_i32_1 = arith.constant 0 : i32
    return %c0_i32, %c0_i32_0 : i32, i32
  }
  func.func @transform_2(%arg0: i32) -> (i32, i32) {
    %c0_i32 = arith.constant 0 : i32
    %c0_i32_0 = arith.constant 0 : i32
    %c0_i32_1 = arith.constant 0 : i32
    return %c0_i32, %c0_i32_0 : i32, i32
  }
  func.func @transform_3(%arg0: i32) -> (i32, i32) {
    %c0_i32 = arith.constant 0 : i32
    %c0_i32_0 = arith.constant 0 : i32
    %c0_i32_1 = arith.constant 0 : i32
    return %c0_i32, %c0_i32_0 : i32, i32
  }
  func.func @transform_4(%arg0: i32) -> (i32, i32) {
    %c0_i32 = arith.constant 0 : i32
    %c0_i32_0 = arith.constant 0 : i32
    %c0_i32_1 = arith.constant 0 : i32
    return %c0_i32, %c0_i32_0 : i32, i32
  }
  func.func @transform_5(%arg0: i32) -> (i32, i32) {
    %c0_i32 = arith.constant 0 : i32
    %c0_i32_0 = arith.constant 0 : i32
    return %arg0, %c0_i32 : i32, i32
  }
}

</mosaic_0001>

<llo_original>
// kernel: mlp_forward.1
$region0: #{mlp_forward.1}
  #allocation0 [shape = 'u32[]', space=smem, size = 0x4, offset = 0x4, fixed_abs, tag = 'smem constant byte address 0x4 - core index']
  #allocation1 [shape = 'u32[144,128]{1,0:T(1,128)}', space=vmem, size = 0x12000, scoped, tag = 'internal scratch']
  %s0 = inlined_call_operand.vmem [shape: f32[8,1024], index: 0, kind: input, shape index: {}]
  %s1 = inlined_call_operand.vmem [shape: bf16[1024,128], index: 1, kind: input, shape index: {}]
  %s2 = inlined_call_operand.vmem [shape: f32[1,128], index: 2, kind: input, shape index: {}]
  %s3 = inlined_call_operand.vmem [shape: bf16[128,128], index: 3, kind: input, shape index: {}]
  %s4 = inlined_call_operand.vmem [shape: f32[1,128], index: 4, kind: input, shape index: {}]
  %s5 = inlined_call_operand.vmem [shape: bf16[8,128], index: 5, kind: output, shape index: {}]
  %s6 = sld [smem:[#allocation0]]
  $region30: #{mlp_forward.1} parent=0
    _
  %s8 = ssub.s32 1, %s6
  %s9 = scalar_select 0, %s8, %s6
  // Predicated region
  $region2: #{mlp_forward.1} parent=0 // pred_check
    _
  $region3: #{mlp_forward.1} parent=0 // pred_check_branch
    %11 = sbr.rel (0) target = $region5
  $region4: #{mlp_forward.1} parent=0 // pred_region
    _
  $region5: #{mlp_forward.1} parent=0 // pred_fallthru
    _
  // Predicated region
  $region6: #{mlp_forward.1} parent=0 // pred_check
    _
  $region7: #{mlp_forward.1} parent=0 // pred_check_branch
    %13 = sbr.rel (0) target = $region9
  $region8: #{mlp_forward.1} parent=0 // pred_region
    _
  $region9: #{mlp_forward.1} parent=0 // pred_fallthru
    _
  // Predicated region
  $region10: #{mlp_forward.1} parent=0 // pred_check
    _
  $region11: #{mlp_forward.1} parent=0 // pred_check_branch
    %15 = sbr.rel (0) target = $region13
  $region12: #{mlp_forward.1} parent=0 // pred_region
    _
  $region13: #{mlp_forward.1} parent=0 // pred_fallthru
    _
  // Predicated region
  $region14: #{mlp_forward.1} parent=0 // pred_check
    _
  $region15: #{mlp_forward.1} parent=0 // pred_check_branch
    %17 = sbr.rel (0) target = $region17
  $region16: #{mlp_forward.1} parent=0 // pred_region
    _
  $region17: #{mlp_forward.1} parent=0 // pred_fallthru
    _
  // Predicated region
  $region18: #{mlp_forward.1} parent=0 // pred_check
    _
  $region19: #{mlp_forward.1} parent=0 // pred_check_branch
    %19 = sbr.rel (0) target = $region21
  $region20: #{mlp_forward.1} parent=0 // pred_region
    _
  $region21: #{mlp_forward.1} parent=0 // pred_fallthru
    _
  %v21 = vld [vmem:[%s0] sm:$0xff]
  %v22 = vld [vmem:[%s0 + $0x8] sm:$0xff]
  %v23 = vld [vmem:[%s0 + $0x10] sm:$0xff]
  %v24 = vld [vmem:[%s0 + $0x18] sm:$0xff]
  %v25 = vld [vmem:[%s0 + $0x20] sm:$0xff]
  %v26 = vld [vmem:[%s0 + $0x28] sm:$0xff]
  %v27 = vld [vmem:[%s0 + $0x30] sm:$0xff]
  %v28 = vld [vmem:[%s0 + $0x38] sm:$0xff]
  %v29 = vpack.c.bf16 %v21, %v21
  %v30 = vpack.c.bf16 %v22, %v22
  %v31 = vpack.c.bf16 %v23, %v23
  %v32 = vpack.c.bf16 %v24, %v24
  %v33 = vpack.c.bf16 %v25, %v25
  %v34 = vpack.c.bf16 %v26, %v26
  %v35 = vpack.c.bf16 %v27, %v27
  %v36 = vpack.c.bf16 %v28, %v28
  %v37 = vld [vmem:[%s1] sm:$0xf]
  %v38 = vld [vmem:[%s1 + $0x4] sm:$0xf]
  %v39 = vld [vmem:[%s1 + $0x8] sm:$0xf]
  %v40 = vld [vmem:[%s1 + $0xc] sm:$0xf]
  %v41 = vld [vmem:[%s1 + $0x10] sm:$0xf]
  %v42 = vld [vmem:[%s1 + $0x14] sm:$0xf]
  %v43 = vld [vmem:[%s1 + $0x18] sm:$0xf]
  %v44 = vld [vmem:[%s1 + $0x1c] sm:$0xf]
  %v45 = vld [vmem:[%s1 + $0x20] sm:$0xf]
  %v46 = vld [vmem:[%s1 + $0x24] sm:$0xf]
  %v47 = vld [vmem:[%s1 + $0x28] sm:$0xf]
  %v48 = vld [vmem:[%s1 + $0x2c] sm:$0xf]
  %v49 = vld [vmem:[%s1 + $0x30] sm:$0xf]
  %v50 = vld [vmem:[%s1 + $0x34] sm:$0xf]
  %v51 = vld [vmem:[%s1 + $0x38] sm:$0xf]
  %v52 = vld [vmem:[%s1 + $0x3c] sm:$0xf]
  %v53 = vld [vmem:[%s1 + $0x40] sm:$0xf]
  %v54 = vld [vmem:[%s1 + $0x44] sm:$0xf]
  %v55 = vld [vmem:[%s1 + $0x48] sm:$0xf]
  %v56 = vld [vmem:[%s1 + $0x4c] sm:$0xf]
  %v57 = vld [vmem:[%s1 + $0x50] sm:$0xf]
  %v58 = vld [vmem:[%s1 + $0x54] sm:$0xf]
  %v59 = vld [vmem:[%s1 + $0x58] sm:$0xf]
  %v60 = vld [vmem:[%s1 + $0x5c] sm:$0xf]
  %v61 = vld [vmem:[%s1 + $0x60] sm:$0xf]
  %v62 = vld [vmem:[%s1 + $0x64] sm:$0xf]
  %v63 = vld [vmem:[%s1 + $0x68] sm:$0xf]
  %v64 = vld [vmem:[%s1 + $0x6c] sm:$0xf]
  %v65 = vld [vmem:[%s1 + $0x70] sm:$0xf]
  %v66 = vld [vmem:[%s1 + $0x74] sm:$0xf]
  %v67 = vld [vmem:[%s1 + $0x78] sm:$0xf]
  %v68 = vld [vmem:[%s1 + $0x7c] sm:$0xf]
  %v69 = vld [vmem:[%s1 + $0x80] sm:$0xf]
  %v70 = vld [vmem:[%s1 + $0x84] sm:$0xf]
  %v71 = vld [vmem:[%s1 + $0x88] sm:$0xf]
  %v72 = vld [vmem:[%s1 + $0x8c] sm:$0xf]
  %v73 = vld [vmem:[%s1 + $0x90] sm:$0xf]
  %v74 = vld [vmem:[%s1 + $0x94] sm:$0xf]
  %v75 = vld [vmem:[%s1 + $0x98] sm:$0xf]
  %v76 = vld [vmem:[%s1 + $0x9c] sm:$0xf]
  %v77 = vld [vmem:[%s1 + $0xa0] sm:$0xf]
  %v78 = vld [vmem:[%s1 + $0xa4] sm:$0xf]
  %v79 = vld [vmem:[%s1 + $0xa8] sm:$0xf]
  %v80 = vld [vmem:[%s1 + $0xac] sm:$0xf]
  %v81 = vld [vmem:[%s1 + $0xb0] sm:$0xf]
  %v82 = vld [vmem:[%s1 + $0xb4] sm:$0xf]
  %v83 = vld [vmem:[%s1 + $0xb8] sm:$0xf]
  %v84 = vld [vmem:[%s1 + $0xbc] sm:$0xf]
  %v85 = vld [vmem:[%s1 + $0xc0] sm:$0xf]
  %v86 = vld [vmem:[%s1 + $0xc4] sm:$0xf]
  %v87 = vld [vmem:[%s1 + $0xc8] sm:$0xf]
  %v88 = vld [vmem:[%s1 + $0xcc] sm:$0xf]
  %v89 = vld [vmem:[%s1 + $0xd0] sm:$0xf]
  %v90 = vld [vmem:[%s1 + $0xd4] sm:$0xf]
  %v91 = vld [vmem:[%s1 + $0xd8] sm:$0xf]
  %v92 = vld [vmem:[%s1 + $0xdc] sm:$0xf]
  %v93 = vld [vmem:[%s1 + $0xe0] sm:$0xf]
  %v94 = vld [vmem:[%s1 + $0xe4] sm:$0xf]
  %v95 = vld [vmem:[%s1 + $0xe8] sm:$0xf]
  %v96 = vld [vmem:[%s1 + $0xec] sm:$0xf]
  %v97 = vld [vmem:[%s1 + $0xf0] sm:$0xf]
  %v98 = vld [vmem:[%s1 + $0xf4] sm:$0xf]
  %v99 = vld [vmem:[%s1 + $0xf8] sm:$0xf]
  %v100 = vld [vmem:[%s1 + $0xfc] sm:$0xf]
  %v101 = vld [vmem:[%s1 + $0x100] sm:$0xf]
  %v102 = vld [vmem:[%s1 + $0x104] sm:$0xf]
  %v103 = vld [vmem:[%s1 + $0x108] sm:$0xf]
  %v104 = vld [vmem:[%s1 + $0x10c] sm:$0xf]
  %v105 = vld [vmem:[%s1 + $0x110] sm:$0xf]
  %v106 = vld [vmem:[%s1 + $0x114] sm:$0xf]
  %v107 = vld [vmem:[%s1 + $0x118] sm:$0xf]
  %v108 = vld [vmem:[%s1 + $0x11c] sm:$0xf]
  %v109 = vld [vmem:[%s1 + $0x120] sm:$0xf]
  %v110 = vld [vmem:[%s1 + $0x124] sm:$0xf]
  %v111 = vld [vmem:[%s1 + $0x128] sm:$0xf]
  %v112 = vld [vmem:[%s1 + $0x12c] sm:$0xf]
  %v113 = vld [vmem:[%s1 + $0x130] sm:$0xf]
  %v114 = vld [vmem:[%s1 + $0x134] sm:$0xf]
  %v115 = vld [vmem:[%s1 + $0x138] sm:$0xf]
  %v116 = vld [vmem:[%s1 + $0x13c] sm:$0xf]
  %v117 = vld [vmem:[%s1 + $0x140] sm:$0xf]
  %v118 = vld [vmem:[%s1 + $0x144] sm:$0xf]
  %v119 = vld [vmem:[%s1 + $0x148] sm:$0xf]
  %v120 = vld [vmem:[%s1 + $0x14c] sm:$0xf]
  %v121 = vld [vmem:[%s1 + $0x150] sm:$0xf]
  %v122 = vld [vmem:[%s1 + $0x154] sm:$0xf]
  %v123 = vld [vmem:[%s1 + $0x158] sm:$0xf]
  %v124 = vld [vmem:[%s1 + $0x15c] sm:$0xf]
  %v125 = vld [vmem:[%s1 + $0x160] sm:$0xf]
  %v126 = vld [vmem:[%s1 + $0x164] sm:$0xf]
  %v127 = vld [vmem:[%s1 + $0x168] sm:$0xf]
  %v128 = vld [vmem:[%s1 + $0x16c] sm:$0xf]
  %v129 = vld [vmem:[%s1 + $0x170] sm:$0xf]
  %v130 = vld [vmem:[%s1 + $0x174] sm:$0xf]
  %v131 = vld [vmem:[%s1 + $0x178] sm:$0xf]
  %v132 = vld [vmem:[%s1 + $0x17c] sm:$0xf]
  %v133 = vld [vmem:[%s1 + $0x180] sm:$0xf]
  %v134 = vld [vmem:[%s1 + $0x184] sm:$0xf]
  %v135 = vld [vmem:[%s1 + $0x188] sm:$0xf]
  %v136 = vld [vmem:[%s1 + $0x18c] sm:$0xf]
  %v137 = vld [vmem:[%s1 + $0x190] sm:$0xf]
  %v138 = vld [vmem:[%s1 + $0x194] sm:$0xf]
  %v139 = vld [vmem:[%s1 + $0x198] sm:$0xf]
  %v140 = vld [vmem:[%s1 + $0x19c] sm:$0xf]
  %v141 = vld [vmem:[%s1 + $0x1a0] sm:$0xf]
  %v142 = vld [vmem:[%s1 + $0x1a4] sm:$0xf]
  %v143 = vld [vmem:[%s1 + $0x1a8] sm:$0xf]
  %v144 = vld [vmem:[%s1 + $0x1ac] sm:$0xf]
  %v145 = vld [vmem:[%s1 + $0x1b0] sm:$0xf]
  %v146 = vld [vmem:[%s1 + $0x1b4] sm:$0xf]
  %v147 = vld [vmem:[%s1 + $0x1b8] sm:$0xf]
  %v148 = vld [vmem:[%s1 + $0x1bc] sm:$0xf]
  %v149 = vld [vmem:[%s1 + $0x1c0] sm:$0xf]
  %v150 = vld [vmem:[%s1 + $0x1c4] sm:$0xf]
  %v151 = vld [vmem:[%s1 + $0x1c8] sm:$0xf]
  %v152 = vld [vmem:[%s1 + $0x1cc] sm:$0xf]
  %v153 = vld [vmem:[%s1 + $0x1d0] sm:$0xf]
  %v154 = vld [vmem:[%s1 + $0x1d4] sm:$0xf]
  %v155 = vld [vmem:[%s1 + $0x1d8] sm:$0xf]
  %v156 = vld [vmem:[%s1 + $0x1dc] sm:$0xf]
  %v157 = vld [vmem:[%s1 + $0x1e0] sm:$0xf]
  %v158 = vld [vmem:[%s1 + $0x1e4] sm:$0xf]
  %v159 = vld [vmem:[%s1 + $0x1e8] sm:$0xf]
  %v160 = vld [vmem:[%s1 + $0x1ec] sm:$0xf]
  %v161 = vld [vmem:[%s1 + $0x1f0] sm:$0xf]
  %v162 = vld [vmem:[%s1 + $0x1f4] sm:$0xf]
  %v163 = vld [vmem:[%s1 + $0x1f8] sm:$0xf]
  %v164 = vld [vmem:[%s1 + $0x1fc] sm:$0xf]
  %v165 = vld [vmem:[%s2] sm:$0x1]
  %v167 = vlaneseq
  %v168 = vshrl.u32 %v167, 7
  %v169 = vsub.s32 0, %v168
  %v170 = vrot.slane %v165, %v169
  %v300 = vunpack.c.l.b16 %v37
  %v301 = vunpack.c.l.b16 %v38
  %v302 = vunpack.c.l.b16 %v39
  %v303 = vunpack.c.l.b16 %v40
  %v304 = vunpack.c.l.b16 %v41
  %v305 = vunpack.c.l.b16 %v42
  %v306 = vunpack.c.l.b16 %v43
  %v307 = vunpack.c.l.b16 %v44
  %v308 = vunpack.c.l.b16 %v45
  %v309 = vunpack.c.l.b16 %v46
  %v310 = vunpack.c.l.b16 %v47
  %v311 = vunpack.c.l.b16 %v48
  %v312 = vunpack.c.l.b16 %v49
  %v313 = vunpack.c.l.b16 %v50
  %v314 = vunpack.c.l.b16 %v51
  %v315 = vunpack.c.l.b16 %v52
  %v316 = vunpack.c.l.b16 %v53
  %v317 = vunpack.c.l.b16 %v54
  %v318 = vunpack.c.l.b16 %v55
  %v319 = vunpack.c.l.b16 %v56
  %v320 = vunpack.c.l.b16 %v57
  %v321 = vunpack.c.l.b16 %v58
  %v322 = vunpack.c.l.b16 %v59
  %v323 = vunpack.c.l.b16 %v60
  %v324 = vunpack.c.l.b16 %v61
  %v325 = vunpack.c.l.b16 %v62
  %v326 = vunpack.c.l.b16 %v63
  %v327 = vunpack.c.l.b16 %v64
  %v328 = vunpack.c.l.b16 %v65
  %v329 = vunpack.c.l.b16 %v66
  %v330 = vunpack.c.l.b16 %v67
  %v331 = vunpack.c.l.b16 %v68
  %v332 = vunpack.c.l.b16 %v69
  %v333 = vunpack.c.l.b16 %v70
  %v334 = vunpack.c.l.b16 %v71
  %v335 = vunpack.c.l.b16 %v72
  %v336 = vunpack.c.l.b16 %v73
  %v337 = vunpack.c.l.b16 %v74
  %v338 = vunpack.c.l.b16 %v75
  %v339 = vunpack.c.l.b16 %v76
  %v340 = vunpack.c.l.b16 %v77
  %v341 = vunpack.c.l.b16 %v78
  %v342 = vunpack.c.l.b16 %v79
  %v343 = vunpack.c.l.b16 %v80
  %v344 = vunpack.c.l.b16 %v81
  %v345 = vunpack.c.l.b16 %v82
  %v346 = vunpack.c.l.b16 %v83
  %v347 = vunpack.c.l.b16 %v84
  %v348 = vunpack.c.l.b16 %v85
  %v349 = vunpack.c.l.b16 %v86
  %v350 = vunpack.c.l.b16 %v87
  %v351 = vunpack.c.l.b16 %v88
  %v352 = vunpack.c.l.b16 %v89
  %v353 = vunpack.c.l.b16 %v90
  %v354 = vunpack.c.l.b16 %v91
  %v355 = vunpack.c.l.b16 %v92
  %v356 = vunpack.c.l.b16 %v93
  %v357 = vunpack.c.l.b16 %v94
  %v358 = vunpack.c.l.b16 %v95
  %v359 = vunpack.c.l.b16 %v96
  %v360 = vunpack.c.l.b16 %v97
  %v361 = vunpack.c.l.b16 %v98
  %v362 = vunpack.c.l.b16 %v99
  %v363 = vunpack.c.l.b16 %v100
  %v364 = vunpack.c.l.b16 %v101
  %v365 = vunpack.c.l.b16 %v102
  %v366 = vunpack.c.l.b16 %v103
  %v367 = vunpack.c.l.b16 %v104
  %v368 = vunpack.c.l.b16 %v105
  %v369 = vunpack.c.l.b16 %v106
  %v370 = vunpack.c.l.b16 %v107
  %v371 = vunpack.c.l.b16 %v108
  %v372 = vunpack.c.l.b16 %v109
  %v373 = vunpack.c.l.b16 %v110
  %v374 = vunpack.c.l.b16 %v111
  %v375 = vunpack.c.l.b16 %v112
  %v376 = vunpack.c.l.b16 %v113
  %v377 = vunpack.c.l.b16 %v114
  %v378 = vunpack.c.l.b16 %v115
  %v379 = vunpack.c.l.b16 %v116
  %v380 = vunpack.c.l.b16 %v117
  %v381 = vunpack.c.l.b16 %v118
  %v382 = vunpack.c.l.b16 %v119
  %v383 = vunpack.c.l.b16 %v120
  %v384 = vunpack.c.l.b16 %v121
  %v385 = vunpack.c.l.b16 %v122
  %v386 = vunpack.c.l.b16 %v123
  %v387 = vunpack.c.l.b16 %v124
  %v388 = vunpack.c.l.b16 %v125
  %v389 = vunpack.c.l.b16 %v126
  %v390 = vunpack.c.l.b16 %v127
  %v391 = vunpack.c.l.b16 %v128
  %v392 = vunpack.c.l.b16 %v129
  %v393 = vunpack.c.l.b16 %v130
  %v394 = vunpack.c.l.b16 %v131
  %v395 = vunpack.c.l.b16 %v132
  %v396 = vunpack.c.l.b16 %v133
  %v397 = vunpack.c.l.b16 %v134
  %v398 = vunpack.c.l.b16 %v135
  %v399 = vunpack.c.l.b16 %v136
  %v400 = vunpack.c.l.b16 %v137
  %v401 = vunpack.c.l.b16 %v138
  %v402 = vunpack.c.l.b16 %v139
  %v403 = vunpack.c.l.b16 %v140
  %v404 = vunpack.c.l.b16 %v141
  %v405 = vunpack.c.l.b16 %v142
  %v406 = vunpack.c.l.b16 %v143
  %v407 = vunpack.c.l.b16 %v144
  %v408 = vunpack.c.l.b16 %v145
  %v409 = vunpack.c.l.b16 %v146
  %v410 = vunpack.c.l.b16 %v147
  %v411 = vunpack.c.l.b16 %v148
  %v412 = vunpack.c.l.b16 %v149
  %v413 = vunpack.c.l.b16 %v150
  %v414 = vunpack.c.l.b16 %v151
  %v415 = vunpack.c.l.b16 %v152
  %v416 = vunpack.c.l.b16 %v153
  %v417 = vunpack.c.l.b16 %v154
  %v418 = vunpack.c.l.b16 %v155
  %v419 = vunpack.c.l.b16 %v156
  %v420 = vunpack.c.l.b16 %v157
  %v421 = vunpack.c.l.b16 %v158
  %v422 = vunpack.c.l.b16 %v159
  %v423 = vunpack.c.l.b16 %v160
  %v424 = vunpack.c.l.b16 %v161
  %v425 = vunpack.c.l.b16 %v162
  %v426 = vunpack.c.l.b16 %v163
  %v427 = vunpack.c.l.b16 %v164
  %v428 = vpack.c.b16 %v301, %v300
  %v429 = vpack.c.b16 %v303, %v302
  %v430 = vpack.c.b16 %v305, %v304
  %v431 = vpack.c.b16 %v307, %v306
  %v432 = vpack.c.b16 %v309, %v308
  %v433 = vpack.c.b16 %v311, %v310
  %v434 = vpack.c.b16 %v313, %v312
  %v435 = vpack.c.b16 %v315, %v314
  %v436 = vpack.c.b16 %v317, %v316
  %v437 = vpack.c.b16 %v319, %v318
  %v438 = vpack.c.b16 %v321, %v320
  %v439 = vpack.c.b16 %v323, %v322
  %v440 = vpack.c.b16 %v325, %v324
  %v441 = vpack.c.b16 %v327, %v326
  %v442 = vpack.c.b16 %v329, %v328
  %v443 = vpack.c.b16 %v331, %v330
  %v444 = vpack.c.b16 %v333, %v332
  %v445 = vpack.c.b16 %v335, %v334
  %v446 = vpack.c.b16 %v337, %v336
  %v447 = vpack.c.b16 %v339, %v338
  %v448 = vpack.c.b16 %v341, %v340
  %v449 = vpack.c.b16 %v343, %v342
  %v450 = vpack.c.b16 %v345, %v344
  %v451 = vpack.c.b16 %v347, %v346
  %v452 = vpack.c.b16 %v349, %v348
  %v453 = vpack.c.b16 %v351, %v350
  %v454 = vpack.c.b16 %v353, %v352
  %v455 = vpack.c.b16 %v355, %v354
  %v456 = vpack.c.b16 %v357, %v356
  %v457 = vpack.c.b16 %v359, %v358
  %v458 = vpack.c.b16 %v361, %v360
  %v459 = vpack.c.b16 %v363, %v362
  %v460 = vpack.c.b16 %v365, %v364
  %v461 = vpack.c.b16 %v367, %v366
  %v462 = vpack.c.b16 %v369, %v368
  %v463 = vpack.c.b16 %v371, %v370
  %v464 = vpack.c.b16 %v373, %v372
  %v465 = vpack.c.b16 %v375, %v374
  %v466 = vpack.c.b16 %v377, %v376
  %v467 = vpack.c.b16 %v379, %v378
  %v468 = vpack.c.b16 %v381, %v380
  %v469 = vpack.c.b16 %v383, %v382
  %v470 = vpack.c.b16 %v385, %v384
  %v471 = vpack.c.b16 %v387, %v386
  %v472 = vpack.c.b16 %v389, %v388
  %v473 = vpack.c.b16 %v391, %v390
  %v474 = vpack.c.b16 %v393, %v392
  %v475 = vpack.c.b16 %v395, %v394
  %v476 = vpack.c.b16 %v397, %v396
  %v477 = vpack.c.b16 %v399, %v398
  %v478 = vpack.c.b16 %v401, %v400
  %v479 = vpack.c.b16 %v403, %v402
  %v480 = vpack.c.b16 %v405, %v404
  %v481 = vpack.c.b16 %v407, %v406
  %v482 = vpack.c.b16 %v409, %v408
  %v483 = vpack.c.b16 %v411, %v410
  %v484 = vpack.c.b16 %v413, %v412
  %v485 = vpack.c.b16 %v415, %v414
  %v486 = vpack.c.b16 %v417, %v416
  %v487 = vpack.c.b16 %v419, %v418
  %v488 = vpack.c.b16 %v421, %v420
  %v489 = vpack.c.b16 %v423, %v422
  %v490 = vpack.c.b16 %v425, %v424
  %v491 = vpack.c.b16 %v427, %v426
  %556 = vmatprep.subr.bf16.mxu0 0
  %557 = vmatpush1.bf16.msra.mxu0 %v428
  %558 = vmatprep.subr.bf16.mxu0 0
  %559 = vmatpush1.bf16.msra.mxu0 %v429
  %560 = vmatprep.subr.bf16.mxu0 0
  %561 = vmatpush1.bf16.msra.mxu0 %v430
  %562 = vmatprep.subr.bf16.mxu0 0
  %563 = vmatpush1.bf16.msra.mxu0 %v431
  %564 = vmatprep.subr.bf16.mxu0 0
  %565 = vmatpush1.bf16.msra.mxu0 %v432
  %566 = vmatprep.subr.bf16.mxu0 0
  %567 = vmatpush1.bf16.msra.mxu0 %v433
  %568 = vmatprep.subr.bf16.mxu0 0
  %569 = vmatpush1.bf16.msra.mxu0 %v434
  %570 = vmatprep.subr.bf16.mxu0 0
  %571 = vmatpush1.bf16.msra.mxu0 %v435
  %572 = vmatprep.subr.bf16.mxu0 0
  %573 = vmatpush1.bf16.msra.mxu0 %v436
  %574 = vmatprep.subr.bf16.mxu0 0
  %575 = vmatpush1.bf16.msra.mxu0 %v437
  %576 = vmatprep.subr.bf16.mxu0 0
  %577 = vmatpush1.bf16.msra.mxu0 %v438
  %578 = vmatprep.subr.bf16.mxu0 0
  %579 = vmatpush1.bf16.msra.mxu0 %v439
  %580 = vmatprep.subr.bf16.mxu0 0
  %581 = vmatpush1.bf16.msra.mxu0 %v440
  %582 = vmatprep.subr.bf16.mxu0 0
  %583 = vmatpush1.bf16.msra.mxu0 %v441
  %584 = vmatprep.subr.bf16.mxu0 0
  %585 = vmatpush1.bf16.msra.mxu0 %v442
  %586 = vmatprep.subr.bf16.mxu0 0
  %587 = vmatpush1.bf16.msra.mxu0 %v443
  %588 = vmatprep.mubr.bf16.mxu0 %v30
  %589 = vmatmul.mubr.bf16.gmra.mrb[0].mxu0 %v29
  %v590 = vpop.f32.mrb[0].mxu0
  %v591 = vadd.f32 %v170, %v590
  %v592 = vpop.f32.mrb[0].mxu0
  %v593 = vpop.f32.mrb[0].mxu0
  %v594 = vpop.f32.mrb[0].mxu0
  %595 = vdwg.mxu0
  %596 = vmatprep.subr.bf16.mxu0 0
  %597 = vmatpush1.bf16.msra.mxu0 %v444
  %598 = vmatprep.subr.bf16.mxu0 0
  %599 = vmatpush1.bf16.msra.mxu0 %v445
  %600 = vmatprep.subr.bf16.mxu0 0
  %601 = vmatpush1.bf16.msra.mxu0 %v446
  %602 = vmatprep.subr.bf16.mxu0 0
  %603 = vmatpush1.bf16.msra.mxu0 %v447
  %604 = vmatprep.subr.bf16.mxu0 0
  %605 = vmatpush1.bf16.msra.mxu0 %v448
  %606 = vmatprep.subr.bf16.mxu0 0
  %607 = vmatpush1.bf16.msra.mxu0 %v449
  %608 = vmatprep.subr.bf16.mxu0 0
  %609 = vmatpush1.bf16.msra.mxu0 %v450
  %610 = vmatprep.subr.bf16.mxu0 0
  %611 = vmatpush1.bf16.msra.mxu0 %v451
  %612 = vmatprep.subr.bf16.mxu0 0
  %613 = vmatpush1.bf16.msra.mxu0 %v452
  %614 = vmatprep.subr.bf16.mxu0 0
  %615 = vmatpush1.bf16.msra.mxu0 %v453
  %616 = vmatprep.subr.bf16.mxu0 0
  %617 = vmatpush1.bf16.msra.mxu0 %v454
  %618 = vmatprep.subr.bf16.mxu0 0
  %619 = vmatpush1.bf16.msra.mxu0 %v455
  %620 = vmatprep.subr.bf16.mxu0 0
  %621 = vmatpush1.bf16.msra.mxu0 %v456
  %622 = vmatprep.subr.bf16.mxu0 0
  %623 = vmatpush1.bf16.msra.mxu0 %v457
  %624 = vmatprep.subr.bf16.mxu0 0
  %625 = vmatpush1.bf16.msra.mxu0 %v458
  %626 = vmatprep.subr.bf16.mxu0 0
  %627 = vmatpush1.bf16.msra.mxu0 %v459
  %628 = vmatprep.mubr.bf16.mxu0 %v32
  %629 = vmatmul.mubr.bf16.gmra.mrb[0].mxu0 %v31
  %v630 = vpop.f32.mrb[0].mxu0
  %v631 = vadd.f32 %v591, %v630
  %v632 = vpop.f32.mrb[0].mxu0
  %v633 = vpop.f32.mrb[0].mxu0
  %v634 = vpop.f32.mrb[0].mxu0
  %635 = vdwg.mxu0
  %636 = vmatprep.subr.bf16.mxu0 0
  %637 = vmatpush1.bf16.msra.mxu0 %v460
  %638 = vmatprep.subr.bf16.mxu0 0
  %639 = vmatpush1.bf16.msra.mxu0 %v461
  %640 = vmatprep.subr.bf16.mxu0 0
  %641 = vmatpush1.bf16.msra.mxu0 %v462
  %642 = vmatprep.subr.bf16.mxu0 0
  %643 = vmatpush1.bf16.msra.mxu0 %v463
  %644 = vmatprep.subr.bf16.mxu0 0
  %645 = vmatpush1.bf16.msra.mxu0 %v464
  %646 = vmatprep.subr.bf16.mxu0 0
  %647 = vmatpush1.bf16.msra.mxu0 %v465
  %648 = vmatprep.subr.bf16.mxu0 0
  %649 = vmatpush1.bf16.msra.mxu0 %v466
  %650 = vmatprep.subr.bf16.mxu0 0
  %651 = vmatpush1.bf16.msra.mxu0 %v467
  %652 = vmatprep.subr.bf16.mxu0 0
  %653 = vmatpush1.bf16.msra.mxu0 %v468
  %654 = vmatprep.subr.bf16.mxu0 0
  %655 = vmatpush1.bf16.msra.mxu0 %v469
  %656 = vmatprep.subr.bf16.mxu0 0
  %657 = vmatpush1.bf16.msra.mxu0 %v470
  %658 = vmatprep.subr.bf16.mxu0 0
  %659 = vmatpush1.bf16.msra.mxu0 %v471
  %660 = vmatprep.subr.bf16.mxu0 0
  %661 = vmatpush1.bf16.msra.mxu0 %v472
  %662 = vmatprep.subr.bf16.mxu0 0
  %663 = vmatpush1.bf16.msra.mxu0 %v473
  %664 = vmatprep.subr.bf16.mxu0 0
  %665 = vmatpush1.bf16.msra.mxu0 %v474
  %666 = vmatprep.subr.bf16.mxu0 0
  %667 = vmatpush1.bf16.msra.mxu0 %v475
  %668 = vmatprep.mubr.bf16.mxu0 %v34
  %669 = vmatmul.mubr.bf16.gmra.mrb[0].mxu0 %v33
  %v670 = vpop.f32.mrb[0].mxu0
  %v671 = vadd.f32 %v631, %v670
  %v672 = vpop.f32.mrb[0].mxu0
  %v673 = vpop.f32.mrb[0].mxu0
  %v674 = vpop.f32.mrb[0].mxu0
  %675 = vdwg.mxu0
  %676 = vmatprep.subr.bf16.mxu0 0
  %677 = vmatpush1.bf16.msra.mxu0 %v476
  %678 = vmatprep.subr.bf16.mxu0 0
  %679 = vmatpush1.bf16.msra.mxu0 %v477
  %680 = vmatprep.subr.bf16.mxu0 0
  %681 = vmatpush1.bf16.msra.mxu0 %v478
  %682 = vmatprep.subr.bf16.mxu0 0
  %683 = vmatpush1.bf16.msra.mxu0 %v479
  %684 = vmatprep.subr.bf16.mxu0 0
  %685 = vmatpush1.bf16.msra.mxu0 %v480
  %686 = vmatprep.subr.bf16.mxu0 0
  %687 = vmatpush1.bf16.msra.mxu0 %v481
  %688 = vmatprep.subr.bf16.mxu0 0
  %689 = vmatpush1.bf16.msra.mxu0 %v482
  %690 = vmatprep.subr.bf16.mxu0 0
  %691 = vmatpush1.bf16.msra.mxu0 %v483
  %692 = vmatprep.subr.bf16.mxu0 0
  %693 = vmatpush1.bf16.msra.mxu0 %v484
  %694 = vmatprep.subr.bf16.mxu0 0
  %695 = vmatpush1.bf16.msra.mxu0 %v485
  %696 = vmatprep.subr.bf16.mxu0 0
  %697 = vmatpush1.bf16.msra.mxu0 %v486
  %698 = vmatprep.subr.bf16.mxu0 0
  %699 = vmatpush1.bf16.msra.mxu0 %v487
  %700 = vmatprep.subr.bf16.mxu0 0
  %701 = vmatpush1.bf16.msra.mxu0 %v488
  %702 = vmatprep.subr.bf16.mxu0 0
  %703 = vmatpush1.bf16.msra.mxu0 %v489
  %704 = vmatprep.subr.bf16.mxu0 0
  %705 = vmatpush1.bf16.msra.mxu0 %v490
  %706 = vmatprep.subr.bf16.mxu0 0
  %707 = vmatpush1.bf16.msra.mxu0 %v491
  %708 = vmatprep.mubr.bf16.mxu0 %v36
  %709 = vmatmul.mubr.bf16.gmra.mrb[0].mxu0 %v35
  %v710 = vpop.f32.mrb[0].mxu0
  %v711 = vadd.f32 %v671, %v710
  %v712 = vpop.f32.mrb[0].mxu0
  %v713 = vpop.f32.mrb[0].mxu0
  %v714 = vpop.f32.mrb[0].mxu0
  %715 = vdwg.mxu0
  %v716 = vmax.f32 %v711, 0.0
  %v717 = vpack.c.bf16 %v716, %v716
  %v718 = vld [vmem:[%s3] sm:$0xf]
  %v719 = vld [vmem:[%s3 + $0x4] sm:$0xf]
  %v720 = vld [vmem:[%s3 + $0x8] sm:$0xf]
  %v721 = vld [vmem:[%s3 + $0xc] sm:$0xf]
  %v722 = vld [vmem:[%s3 + $0x10] sm:$0xf]
  %v723 = vld [vmem:[%s3 + $0x14] sm:$0xf]
  %v724 = vld [vmem:[%s3 + $0x18] sm:$0xf]
  %v725 = vld [vmem:[%s3 + $0x1c] sm:$0xf]
  %v726 = vld [vmem:[%s3 + $0x20] sm:$0xf]
  %v727 = vld [vmem:[%s3 + $0x24] sm:$0xf]
  %v728 = vld [vmem:[%s3 + $0x28] sm:$0xf]
  %v729 = vld [vmem:[%s3 + $0x2c] sm:$0xf]
  %v730 = vld [vmem:[%s3 + $0x30] sm:$0xf]
  %v731 = vld [vmem:[%s3 + $0x34] sm:$0xf]
  %v732 = vld [vmem:[%s3 + $0x38] sm:$0xf]
  %v733 = vld [vmem:[%s3 + $0x3c] sm:$0xf]
  %v734 = vld [vmem:[%s4] sm:$0x1]
  %v736 = vlaneseq
  %v737 = vshrl.u32 %v736, 7
  %v738 = vsub.s32 0, %v737
  %v739 = vrot.slane %v734, %v738
  %v757 = vunpack.c.l.b16 %v718
  %v758 = vunpack.c.l.b16 %v719
  %v759 = vunpack.c.l.b16 %v720
  %v760 = vunpack.c.l.b16 %v721
  %v761 = vunpack.c.l.b16 %v722
  %v762 = vunpack.c.l.b16 %v723
  %v763 = vunpack.c.l.b16 %v724
  %v764 = vunpack.c.l.b16 %v725
  %v765 = vunpack.c.l.b16 %v726
  %v766 = vunpack.c.l.b16 %v727
  %v767 = vunpack.c.l.b16 %v728
  %v768 = vunpack.c.l.b16 %v729
  %v769 = vunpack.c.l.b16 %v730
  %v770 = vunpack.c.l.b16 %v731
  %v771 = vunpack.c.l.b16 %v732
  %v772 = vunpack.c.l.b16 %v733
  %v773 = vpack.c.b16 %v758, %v757
  %v774 = vpack.c.b16 %v760, %v759
  %v775 = vpack.c.b16 %v762, %v761
  %v776 = vpack.c.b16 %v764, %v763
  %v777 = vpack.c.b16 %v766, %v765
  %v778 = vpack.c.b16 %v768, %v767
  %v779 = vpack.c.b16 %v770, %v769
  %v780 = vpack.c.b16 %v772, %v771
  %789 = vmatprep.subr.bf16.mxu0 0
  %790 = vmatpush1.bf16.msra.mxu0 %v773
  %791 = vmatprep.subr.bf16.mxu0 0
  %792 = vmatpush1.bf16.msra.mxu0 %v774
  %793 = vmatprep.subr.bf16.mxu0 0
  %794 = vmatpush1.bf16.msra.mxu0 %v775
  %795 = vmatprep.subr.bf16.mxu0 0
  %796 = vmatpush1.bf16.msra.mxu0 %v776
  %797 = vmatprep.subr.bf16.mxu0 0
  %798 = vmatpush1.bf16.msra.mxu0 %v777
  %799 = vmatprep.subr.bf16.mxu0 0
  %800 = vmatpush1.bf16.msra.mxu0 %v778
  %801 = vmatprep.subr.bf16.mxu0 0
  %802 = vmatpush1.bf16.msra.mxu0 %v779
  %803 = vmatprep.subr.bf16.mxu0 0
  %804 = vmatpush1.bf16.msra.mxu0 %v780
  %805 = vmatprep.subr.bf16.mxu0 0
  %806 = vmatpush1.bf16.msra.mxu0 0
  %807 = vmatprep.subr.bf16.mxu0 0
  %808 = vmatpush1.bf16.msra.mxu0 0
  %809 = vmatprep.subr.bf16.mxu0 0
  %810 = vmatpush1.bf16.msra.mxu0 0
  %811 = vmatprep.subr.bf16.mxu0 0
  %812 = vmatpush1.bf16.msra.mxu0 0
  %813 = vmatprep.subr.bf16.mxu0 0
  %814 = vmatpush1.bf16.msra.mxu0 0
  %815 = vmatprep.subr.bf16.mxu0 0
  %816 = vmatpush1.bf16.msra.mxu0 0
  %817 = vmatprep.subr.bf16.mxu0 0
  %818 = vmatpush1.bf16.msra.mxu0 0
  %819 = vmatprep.subr.bf16.mxu0 0
  %820 = vmatpush1.bf16.msra.mxu0 0
  %821 = vmatprep.mubr.bf16.mxu0 0
  %822 = vmatmul.mubr.bf16.gmra.mrb[0].mxu0 %v717
  %v823 = vpop.f32.mrb[0].mxu0
  %v824 = vadd.f32 %v739, %v823
  %v825 = vpop.f32.mrb[0].mxu0
  %v826 = vpop.f32.mrb[0].mxu0
  %v827 = vpop.f32.mrb[0].mxu0
  %828 = vdwg.mxu0
  %v829 = vpack.c.bf16 %v824, %v824
  %830 = vst [vmem:[%s5] sm:$0xf] %v829
  // Predicated region
  $region22: #{mlp_forward.1} parent=0 // pred_check
    _
  $region23: #{mlp_forward.1} parent=0 // pred_check_branch
    %832 = sbr.rel (0) target = $region25
  $region24: #{mlp_forward.1} parent=0 // pred_region
    _
  $region25: #{mlp_forward.1} parent=0 // pred_fallthru
    _
  // Predicated region
  $region26: #{mlp_forward.1} parent=0 // pred_check
    _
  $region27: #{mlp_forward.1} parent=0 // pred_check_branch
    %834 = sbr.rel (0) target = $region29
  $region28: #{mlp_forward.1} parent=0 // pred_region
    _
  $region29: #{mlp_forward.1} parent=0 // pred_fallthru
    _

</llo_original>
